<compile_context>
chip_gen: v5e
topology: v5e:2x2
jax: 0.10.0
libtpu: 0.0.40
codegen_flags: <defaults>
</compile_context>

<pallas_src>
import functools

import jax
import jax.numpy as jnp
from jax import lax
from jax.experimental import pallas as pl
from jax.experimental.pallas import tpu as pltpu


def mlp_kernel(x_ref, w1_ref, b1_ref, w2_ref, b2_ref, w3_ref, b3_ref, o_ref):
    # x_ref: (block_b, D) in natural layout.  Contract over D (dim 1 of both
    # operands) so the result lands as (10, block_b): batch on the lane axis,
    # no wrapper-side transpose needed.  Fully fused, no HBM round-trips
    # between layers.
    h1 = lax.dot_general(
        w1_ref[...], x_ref[...],
        dimension_numbers=(((1,), (1,)), ((), ())),
        preferred_element_type=jnp.float32) + b1_ref[...]
    h1 = jnp.maximum(h1, 0.0)                               # (10, block_b)
    h2 = jnp.dot(w2_ref[...], h1,
                 preferred_element_type=jnp.float32) + b2_ref[...]
    h2 = jnp.maximum(h2, 0.0)                               # (5, block_b)
    out = jnp.dot(w3_ref[...], h2,
                  preferred_element_type=jnp.float32) + b3_ref[...]
    o_ref[...] = out.astype(o_ref.dtype)                    # (1, block_b) lane-dense


@functools.partial(jax.jit, static_argnames=("block_b",))
def mlp_forward(x, params, *, block_b=32768):
    """x: (B, D).  params: torch-layout weights (out, in), biases (out, 1).

    Returns (B, 1), matching MLPClassifier.forward.
    """
    B, D = x.shape
    w1, b1 = params["w1"], params["b1"]   # (10, D), (10, 1)
    w2, b2 = params["w2"], params["b2"]   # (5, 10), (5, 1)
    w3, b3 = params["w3"], params["b3"]   # (1, 5),  (1, 1)

    # Requested tile, multiple of 128 lanes.
    block_b = max(128, (block_b // 128) * 128)
    if B <= block_b:
        # Single block covering the whole batch exactly: block dims equal the
        # full array dims, so any B is legal and there are no OOB reads.
        block_b = B
        num_blocks = 1
    else:
        num_blocks = pl.cdiv(B, block_b)
    B_out = num_blocks * block_b          # block-aligned output allocation

    # Memory-bound cost hint (x read once + tiny params + tiny output).
    itemsize = jnp.dtype(x.dtype).itemsize
    flops = 2 * B * (D * 10 + 10 * 5 + 5 * 1)
    bytes_accessed = itemsize * (B * D + B) + sum(
        int(p.size) * jnp.dtype(p.dtype).itemsize
        for p in (w1, b1, w2, b2, w3, b3))

    out_t = pl.pallas_call(
        mlp_kernel,
        out_shape=jax.ShapeDtypeStruct((1, B_out), x.dtype),
        grid_spec=pltpu.PrefetchScalarGridSpec(
            num_scalar_prefetch=0,
            grid=(num_blocks,),
            in_specs=[
                # x tiled over batch rows, natural (B, D) layout.
                pl.BlockSpec((block_b, D), lambda i: (i, 0)),
                # Weights/biases: full blocks, constant index (loaded once).
                pl.BlockSpec(w1.shape, lambda i: (0, 0)),
                pl.BlockSpec(b1.shape, lambda i: (0, 0)),
                pl.BlockSpec(w2.shape, lambda i: (0, 0)),
                pl.BlockSpec(b2.shape, lambda i: (0, 0)),
                pl.BlockSpec(w3.shape, lambda i: (0, 0)),
                pl.BlockSpec(b3.shape, lambda i: (0, 0)),
            ],
            out_specs=pl.BlockSpec((1, block_b), lambda i: (0, i)),
        ),
        compiler_params=pltpu.CompilerParams(
            dimension_semantics=("parallel",),
            vmem_limit_bytes=48 * 1024 * 1024),
        cost_estimate=pl.CostEstimate(
            flops=flops, transcendentals=0, bytes_accessed=bytes_accessed),
    )(x, w1, b1, w2, b2, w3, b3)

    # (1, B_out) -> PyTorch (B, 1) layout, dropping block-padding lanes.
    return out_t[0, :B][:, None]


def init_params(key, input_dim):
    """Mirror torch.nn.Linear default init (uniform +/- 1/sqrt(fan_in)).

    Weights stored torch-style (out, in); biases as (out, 1) columns."""
    dims = [(input_dim, 10), (10, 5), (5, 1)]
    params = {}
    for n, (fan_in, fan_out) in enumerate(dims, start=1):
        key, kw, kb = jax.random.split(key, 3)
        bound = 1.0 / (fan_in ** 0.5)
        params[f"w{n}"] = jax.random.uniform(
            kw, (fan_out, fan_in), jnp.float32, minval=-bound, maxval=bound)
        params[f"b{n}"] = jax.random.uniform(
            kb, (fan_out, 1), jnp.float32, minval=-bound, maxval=bound)
    return params


def mlp_reference(x, params):
    h1 = jnp.maximum(x @ params["w1"].T + params["b1"].T, 0.0)
    h2 = jnp.maximum(h1 @ params["w2"].T + params["b2"].T, 0.0)
    return h2 @ params["w3"].T + params["b3"].T


if __name__ == "__main__":
    key = jax.random.PRNGKey(0)
    input_dim = 32
    kp, kx1, kx2 = jax.random.split(key, 3)
    params = init_params(kp, input_dim)

    # Case 1: tiny batch -> single exact block (no padding, no OOB anywhere).
    x_small = jax.random.normal(kx1, (8, input_dim), jnp.float32)
    out_small = jax.block_until_ready(mlp_forward(x_small, params))
    ref_small = mlp_reference(x_small, params)
    assert out_small.shape == (8, 1), out_small.shape
    assert jnp.allclose(out_small, ref_small, atol=1e-5, rtol=1e-5), (
        f"max abs err {jnp.max(jnp.abs(out_small - ref_small))}")

    # Case 2: batch not a multiple of the tile -> exercises the partial final
    # block (OOB rows of x only feed block-padding output lanes, sliced off).
    x_tail = jax.random.normal(kx2, (300, input_dim), jnp.float32)
    out_tail = jax.block_until_ready(mlp_forward(x_tail, params, block_b=128))
    ref_tail = mlp_reference(x_tail, params)
    assert out_tail.shape == (300, 1), out_tail.shape
    assert jnp.allclose(out_tail, ref_tail, atol=1e-5, rtol=1e-5), (
        f"max abs err {jnp.max(jnp.abs(out_tail - ref_tail))}")

    print("KERNEL_OK")
</pallas_src>

<mosaic_0001>
module attributes {stable_mosaic.version = 11 : i64} {
  func.func @mlp_kernel(%arg0: i32, %arg1: memref<8x32xf32, #tpu.memory_space<vmem>>, %arg2: memref<10x32xf32, #tpu.memory_space<vmem>>, %arg3: memref<10x1xf32, #tpu.memory_space<vmem>>, %arg4: memref<5x10xf32, #tpu.memory_space<vmem>>, %arg5: memref<5x1xf32, #tpu.memory_space<vmem>>, %arg6: memref<1x5xf32, #tpu.memory_space<vmem>>, %arg7: memref<1x1xf32, #tpu.memory_space<vmem>>, %arg8: memref<1x8xf32, #tpu.memory_space<vmem>>) attributes {dimension_semantics = [#tpu.dimension_semantics<parallel>], iteration_bounds = array<i64: 1>, scalar_prefetch = 0 : i64, scratch_operands = 0 : i64, tpu.core_type = #tpu.core_type<tc>, window_params = [{transform_indices = @transform_0, window_bounds = array<i64: 8, 32>}, {pipeline_mode = #tpu.pipeline_mode<synchronous>, transform_indices = @transform_1, window_bounds = array<i64: 10, 32>}, {pipeline_mode = #tpu.pipeline_mode<synchronous>, transform_indices = @transform_2, window_bounds = array<i64: 10, 1>}, {pipeline_mode = #tpu.pipeline_mode<synchronous>, transform_indices = @transform_3, window_bounds = array<i64: 5, 10>}, {pipeline_mode = #tpu.pipeline_mode<synchronous>, transform_indices = @transform_4, window_bounds = array<i64: 5, 1>}, {pipeline_mode = #tpu.pipeline_mode<synchronous>, transform_indices = @transform_5, window_bounds = array<i64: 1, 5>}, {pipeline_mode = #tpu.pipeline_mode<synchronous>, transform_indices = @transform_6, window_bounds = array<i64: 1, 1>}, {transform_indices = @transform_7, window_bounds = array<i64: 1, 8>}]} {
    %c0 = arith.constant 0 : index
    %c0_0 = arith.constant 0 : index
    %0 = vector.load %arg2[%c0, %c0_0] : memref<10x32xf32, #tpu.memory_space<vmem>>, vector<10x32xf32>
    %c0_1 = arith.constant 0 : index
    %c0_2 = arith.constant 0 : index
    %1 = vector.load %arg1[%c0_1, %c0_2] : memref<8x32xf32, #tpu.memory_space<vmem>>, vector<8x32xf32>
    %cst = arith.constant dense<0.000000e+00> : vector<10x8xf32>
    %2 = tpu.matmul %0, %1, %cst {dimension_numbers = #tpu.dot_dimension_numbers<[1], [1], [0], [0], [0, 0, 1, 0], [], []>} : vector<10x32xf32>, vector<8x32xf32>, vector<10x8xf32> -> vector<10x8xf32>
    %c0_3 = arith.constant 0 : index
    %c0_4 = arith.constant 0 : index
    %3 = vector.load %arg3[%c0_3, %c0_4] : memref<10x1xf32, #tpu.memory_space<vmem>>, vector<10x1xf32>
    %4 = vector.broadcast %3 : vector<10x1xf32> to vector<10x8xf32>
    %5 = arith.addf %2, %4 : vector<10x8xf32>
    %cst_5 = arith.constant 0.000000e+00 : f32
    %6 = vector.broadcast %cst_5 : f32 to vector<10x8xf32>
    %7 = arith.maximumf %5, %6 : vector<10x8xf32>
    %c0_6 = arith.constant 0 : index
    %c0_7 = arith.constant 0 : index
    %8 = vector.load %arg4[%c0_6, %c0_7] : memref<5x10xf32, #tpu.memory_space<vmem>>, vector<5x10xf32>
    %cst_8 = arith.constant dense<0.000000e+00> : vector<5x8xf32>
    %9 = tpu.matmul %8, %7, %cst_8 {dimension_numbers = #tpu.dot_dimension_numbers<[1], [0], [0], [1], [0, 0, 1, 1], [], []>} : vector<5x10xf32>, vector<10x8xf32>, vector<5x8xf32> -> vector<5x8xf32>
    %c0_9 = arith.constant 0 : index
    %c0_10 = arith.constant 0 : index
    %10 = vector.load %arg5[%c0_9, %c0_10] : memref<5x1xf32, #tpu.memory_space<vmem>>, vector<5x1xf32>
    %11 = vector.broadcast %10 : vector<5x1xf32> to vector<5x8xf32>
    %12 = arith.addf %9, %11 : vector<5x8xf32>
    %cst_11 = arith.constant 0.000000e+00 : f32
    %13 = vector.broadcast %cst_11 : f32 to vector<5x8xf32>
    %14 = arith.maximumf %12, %13 : vector<5x8xf32>
    %c0_12 = arith.constant 0 : index
    %c0_13 = arith.constant 0 : index
    %15 = vector.load %arg6[%c0_12, %c0_13] : memref<1x5xf32, #tpu.memory_space<vmem>>, vector<1x5xf32>
    %cst_14 = arith.constant dense<0.000000e+00> : vector<1x8xf32>
    %16 = tpu.matmul %15, %14, %cst_14 {dimension_numbers = #tpu.dot_dimension_numbers<[1], [0], [0], [1], [0, 0, 1, 1], [], []>} : vector<1x5xf32>, vector<5x8xf32>, vector<1x8xf32> -> vector<1x8xf32>
    %c0_15 = arith.constant 0 : index
    %c0_16 = arith.constant 0 : index
    %17 = vector.load %arg7[%c0_15, %c0_16] : memref<1x1xf32, #tpu.memory_space<vmem>>, vector<1x1xf32>
    %18 = vector.broadcast %17 : vector<1x1xf32> to vector<1x8xf32>
    %19 = arith.addf %16, %18 : vector<1x8xf32>
    %c0_17 = arith.constant 0 : index
    %c0_18 = arith.constant 0 : index
    %20 = vector.load %arg8[%c0_17, %c0_18] : memref<1x8xf32, #tpu.memory_space<vmem>>, vector<1x8xf32>
    tpu.vector_store %arg8[%c0_17, %c0_18], %19 {strides = array<i32>} : memref<1x8xf32, #tpu.memory_space<vmem>>, vector<1x8xf32>,
    return
  }
  func.func @transform_0(%arg0: i32) -> (i32, i32) {
    %c0_i32 = arith.constant 0 : i32
    %c0_i32_0 = arith.constant 0 : i32
    return %arg0, %c0_i32 : i32, i32
  }
  func.func @transform_1(%arg0: i32) -> (i32, i32) {
    %c0_i32 = arith.constant 0 : i32
    %c0_i32_0 = arith.constant 0 : i32
    %c0_i32_1 = arith.constant 0 : i32
    return %c0_i32, %c0_i32_0 : i32, i32
  }
  func.func @transform_2(%arg0: i32) -> (i32, i32) {
    %c0_i32 = arith.constant 0 : i32
    %c0_i32_0 = arith.constant 0 : i32
    %c0_i32_1 = arith.constant 0 : i32
    return %c0_i32, %c0_i32_0 : i32, i32
  }
  func.func @transform_3(%arg0: i32) -> (i32, i32) {
    %c0_i32 = arith.constant 0 : i32
    %c0_i32_0 = arith.constant 0 : i32
    %c0_i32_1 = arith.constant 0 : i32
    return %c0_i32, %c0_i32_0 : i32, i32
  }
  func.func @transform_4(%arg0: i32) -> (i32, i32) {
    %c0_i32 = arith.constant 0 : i32
    %c0_i32_0 = arith.constant 0 : i32
    %c0_i32_1 = arith.constant 0 : i32
    return %c0_i32, %c0_i32_0 : i32, i32
  }
  func.func @transform_5(%arg0: i32) -> (i32, i32) {
    %c0_i32 = arith.constant 0 : i32
    %c0_i32_0 = arith.constant 0 : i32
    %c0_i32_1 = arith.constant 0 : i32
    return %c0_i32, %c0_i32_0 : i32, i32
  }
  func.func @transform_6(%arg0: i32) -> (i32, i32) {
    %c0_i32 = arith.constant 0 : i32
    %c0_i32_0 = arith.constant 0 : i32
    %c0_i32_1 = arith.constant 0 : i32
    return %c0_i32, %c0_i32_0 : i32, i32
  }
  func.func @transform_7(%arg0: i32) -> (i32, i32) {
    %c0_i32 = arith.constant 0 : i32
    %c0_i32_0 = arith.constant 0 : i32
    return %c0_i32, %arg0 : i32, i32
  }
}

</mosaic_0001>

<llo_original>
// kernel: mlp_forward.1
$region0: #{mlp_forward.1}
  #allocation0 [shape = 'u32[]', space=smem, size = 0x4, offset = 0x4, fixed_abs, tag = 'smem constant byte address 0x4 - core index']
  #allocation1 [shape = 'u32[72,128]{1,0:T(1,128)}', space=vmem, size = 0x9000, scoped, tag = 'internal scratch']
  #allocation2 [shape = 'f32[1,1]{1,0:T(1,128)S(1)}', space=vmem, size = 0x200, scoped, tag = 'scoped memory for mlp_forward.1']
  %s0 = inlined_call_operand.vmem [shape: f32[8,32], index: 0, kind: input, shape index: {}]
  %s1 = inlined_call_operand.vmem [shape: f32[10,32], index: 1, kind: input, shape index: {}]
  %s2 = inlined_call_operand.vmem [shape: f32[10,1], index: 2, kind: input, shape index: {}]
  %s3 = inlined_call_operand.hbm [shape: f32[5,10], index: 3, kind: input, shape index: {}]
  %s4 = inlined_call_operand.vmem [shape: f32[5,1], index: 4, kind: input, shape index: {}]
  %s5 = inlined_call_operand.vmem [shape: f32[1,5], index: 5, kind: input, shape index: {}]
  %s6 = inlined_call_operand.<no memory space> [shape: f32[1,1], index: 6, kind: input, shape index: {}]
  %s7 = inlined_call_operand.hbm [shape: f32[1,8], index: 7, kind: output, shape index: {}]
  %s8 = sld [smem:[#allocation0]]
  $region42: #{mlp_forward.1} parent=0
    _
  %s10 = ssub.s32 1, %s8
  %s11 = scalar_select 0, %s10, %s8
  %v12 = vstv %s6
  %13 = vst [vmem:[#allocation2] sm:$0x1] %v12
  $region1: #{mlp_forward.1} parent=0
    #allocation3 [shape = 'u8[4096]{0}', space=vmem, size = 0x1000, scoped, tag = 'input window, operand 3, single buffered']
    #allocation4 [shape = 's32[1]{0}', space=sflag, size = 0x4, scoped, tag = 'scoped memory for mlp_forward.1']
    #allocation5 [shape = 's32[1]{0}', space=sflag, size = 0x4, scoped, tag = 'scoped memory for mlp_forward.1']
    #allocation6 [shape = 'u8[512]{0}', space=vmem, size = 0x400, scoped, tag = 'output window, operand 0, single buffered']
    %14 = vsyncpa [#allocation4], 0
    %15 = vsyncpa [#allocation5], 0
    // Predicated region
    $region2: #{mlp_forward.1} parent=1 // pred_check
      _
    $region3: #{mlp_forward.1} parent=1 // pred_check_branch
      %17 = sbr.rel (0) target = $region5
    $region4: #{mlp_forward.1} parent=1 // pred_region
      _
    $region5: #{mlp_forward.1} parent=1 // pred_fallthru
      _
    // Predicated region
    $region6: #{mlp_forward.1} parent=1 // pred_check
      _
    $region7: #{mlp_forward.1} parent=1 // pred_check_branch
      %19 = sbr.rel (0) target = $region9
    $region8: #{mlp_forward.1} parent=1 // pred_region
      _
    $region9: #{mlp_forward.1} parent=1 // pred_fallthru
      _
    // Predicated region
    $region10: #{mlp_forward.1} parent=1 // pred_check
      _
    $region11: #{mlp_forward.1} parent=1 // pred_check_branch
      %21 = sbr.rel (0) target = $region13
    $region12: #{mlp_forward.1} parent=1 // pred_region
      _
    $region13: #{mlp_forward.1} parent=1 // pred_fallthru
      _
    // Predicated region
    $region14: #{mlp_forward.1} parent=1 // pred_check
      _
    $region15: #{mlp_forward.1} parent=1 // pred_check_branch
      %23 = sbr.rel (0) target = $region17
    $region16: #{mlp_forward.1} parent=1 // pred_region
      %25 = vsyncadd [#allocation4], 0
      %s27 = sshll.u32 %s3, 4
      %s28 = int_to_ptr.hbm [resolvable:$true] %s27
      %s29 = sshll.u32 [#allocation3], 4
      %s30 = int_to_ptr.vmem [resolvable:$true] %s29
      %32 = dma.hbm_to_vmem [thread:$0]  %s28, 128, %s30, [#allocation4]
    $region17: #{mlp_forward.1} parent=1 // pred_fallthru
      _
    // Predicated region
    $region18: #{mlp_forward.1} parent=1 // pred_check
      _
    $region19: #{mlp_forward.1} parent=1 // pred_check_branch
      %34 = sbr.rel (0) target = $region21
    $region20: #{mlp_forward.1} parent=1 // pred_region
      _
    $region21: #{mlp_forward.1} parent=1 // pred_fallthru
      _
    // Predicated region
    $region22: #{mlp_forward.1} parent=1 // pred_check
      _
    $region23: #{mlp_forward.1} parent=1 // pred_check_branch
      %36 = sbr.rel (0) target = $region25
    $region24: #{mlp_forward.1} parent=1 // pred_region
      _
    $region25: #{mlp_forward.1} parent=1 // pred_fallthru
      _
    // Predicated region
    $region26: #{mlp_forward.1} parent=1 // pred_check
      _
    $region27: #{mlp_forward.1} parent=1 // pred_check_branch
      %38 = sbr.rel (0) target = $region29
    $region28: #{mlp_forward.1} parent=1 // pred_region
      _
    $region29: #{mlp_forward.1} parent=1 // pred_fallthru
      _
    // Predicated region
    $region30: #{mlp_forward.1} parent=1 // pred_check
      _
    $region31: #{mlp_forward.1} parent=1 // pred_check_branch
      %40 = sbr.rel (0) target = $region33
    $region32: #{mlp_forward.1} parent=1 // pred_region
      %42 = dma.done [#allocation4], 128
    $region33: #{mlp_forward.1} parent=1 // pred_fallthru
      _
    %v43 = vld [vmem:[%s1] sm:$0xff]
    %v44 = vld [vmem:[%s1 + $0x8] sm:$0x3]
    %v45 = vld [vmem:[%s0] sm:$0xff]
    %v46 = vld [vmem:[%s2] sm:$0xff]
    %v47 = vld [vmem:[%s2 + $0x8] sm:$0x3]
    %49 = vset.pattern.permute.xlu0 0
    %50 = vperm.xlu0 %49, %v46
    %v51 = vpop.permute.xlu0 %50
    %54 = vset.pattern.permute.xlu0 0
    %55 = vperm.xlu0 %54, %v47
    %v56 = vpop.permute.xlu0 %55
    %vm58 = vcmask 261120
    %v60 = vsel %vm58, %v43, 0
    %v63 = vsel %vm58, %v44, 0
    %v66 = vsel %vm58, %v45, 0
    %68 = vmatpush.xpose.msra.mxu0 0.0
    %69 = vmatpush.xpose.msra.mxu0 0.0
    %70 = vmatpush.xpose.msra.mxu0 0.0
    %71 = vmatpush.xpose.msra.mxu0 0.0
    %72 = vmatpush.xpose.msra.mxu0 0.0
    %73 = vmatpush.xpose.msra.mxu0 0.0
    %74 = vmatpush.xpose.msra.mxu0 0.0
    %75 = vmatpush.xpose.msra.mxu0 0.0
    %76 = vmatpush.xpose.msra.mxu0 0.0
    %77 = vmatpush.xpose.msra.mxu0 0.0
    %78 = vmatpush.xpose.msra.mxu0 0.0
    %79 = vmatpush.xpose.msra.mxu0 0.0
    %80 = vmatpush.xpose.msra.mxu0 0.0
    %81 = vmatpush.xpose.msra.mxu0 0.0
    %82 = vmatpush.xpose.msra.mxu0 0.0
    %83 = vmatpush.xpose.msra.mxu0 %v66
    %84 = vmatmul.f32.gmra.mxu0 %v60
    %v85 = vpop.f32.mrf.mxu0
    %v86 = vadd.f32 %v51, %v85
    %87 = vmatmul.f32.gmra.mxu0 %v63
    %v88 = vpop.f32.mrf.mxu0
    %v89 = vadd.f32 %v56, %v88
    %90 = vdwg.mxu0
    %v91 = vmax.f32 %v86, 0.0
    %v92 = vmax.f32 %v89, 0.0
    %v93 = vld [vmem:[#allocation3] sm:$0x1f]
    %v94 = vld [vmem:[%s4] sm:$0x1f]
    %96 = vset.pattern.permute.xlu0 0
    %97 = vperm.xlu0 %96, %v94
    %v98 = vpop.permute.xlu0 %97
    %vm100 = vcmask 80896
    %v102 = vsel %vm100, %v93, 0
    %vm104 = vcmask 1041408
    %v106 = vsel %vm104, %v92, 0
    %108 = vmatpush.msra.mxu0 0.0
    %109 = vmatpush.msra.mxu0 0.0
    %110 = vmatpush.msra.mxu0 0.0
    %111 = vmatpush.msra.mxu0 0.0
    %112 = vmatpush.msra.mxu0 0.0
    %113 = vmatpush.msra.mxu0 0.0
    %114 = vmatpush.msra.mxu0 0.0
    %115 = vmatpush.msra.mxu0 0.0
    %116 = vmatpush.msra.mxu0 0.0
    %117 = vmatpush.msra.mxu0 0.0
    %118 = vmatpush.msra.mxu0 0.0
    %119 = vmatpush.msra.mxu0 0.0
    %120 = vmatpush.msra.mxu0 0.0
    %121 = vmatpush.msra.mxu0 0.0
    %122 = vmatpush.msra.mxu0 %v106
    %123 = vmatpush.msra.mxu0 %v91
    %124 = vmatmul.f32.gmra.mxu0 %v102
    %v125 = vpop.f32.mrf.mxu0
    %v126 = vadd.f32 %v98, %v125
    %127 = vdwg.mxu0
    %v128 = vmax.f32 %v126, 0.0
    %v129 = vld [vmem:[%s5] sm:$0x1]
    %v130 = vld [vmem:[#allocation2] sm:$0x1]
    %132 = vset.pattern.permute.xlu0 0
    %133 = vperm.xlu0 %132, %v130
    %v134 = vpop.permute.xlu0 %133
    %v136 = vperm.slane %v134, 0
    %vm137 = vcmask 39936
    %v139 = vsel %vm137, %v129, 0
    %vm141 = vcmask 1044480
    %v143 = vsel %vm141, %v128, 0
    %145 = vmatpush.msra.mxu0 0.0
    %146 = vmatpush.msra.mxu0 0.0
    %147 = vmatpush.msra.mxu0 0.0
    %148 = vmatpush.msra.mxu0 0.0
    %149 = vmatpush.msra.mxu0 0.0
    %150 = vmatpush.msra.mxu0 0.0
    %151 = vmatpush.msra.mxu0 0.0
    %152 = vmatpush.msra.mxu0 0.0
    %153 = vmatpush.msra.mxu0 0.0
    %154 = vmatpush.msra.mxu0 0.0
    %155 = vmatpush.msra.mxu0 0.0
    %156 = vmatpush.msra.mxu0 0.0
    %157 = vmatpush.msra.mxu0 0.0
    %158 = vmatpush.msra.mxu0 0.0
    %159 = vmatpush.msra.mxu0 0.0
    %160 = vmatpush.msra.mxu0 %v143
    %161 = vmatmul.f32.gmra.mxu0 %v139
    %v162 = vpop.f32.mrf.mxu0
    %v163 = vadd.f32 %v136, %v162
    %164 = vdwg.mxu0
    %vm165 = vcmask 57344
    %166 = vst.msk [vmem:[#allocation6] sm:$0x1] %vm165, %v163
    // Predicated region
    $region34: #{mlp_forward.1} parent=1 // pred_check
      _
    $region35: #{mlp_forward.1} parent=1 // pred_check_branch
      %168 = sbr.rel (0) target = $region37
    $region36: #{mlp_forward.1} parent=1 // pred_region
      %170 = vsyncadd [#allocation5], 0
      %s172 = sshll.u32 [#allocation6], 4
      %s173 = int_to_ptr.vmem [resolvable:$true] %s172
      %s174 = sshll.u32 %s7, 4
      %s175 = int_to_ptr.hbm [resolvable:$true] %s174
      %177 = dma.vmem_to_hbm [thread:$0]  %s173, 16, %s175, [#allocation5]
    $region37: #{mlp_forward.1} parent=1 // pred_fallthru
      _
    // Predicated region
    $region38: #{mlp_forward.1} parent=1 // pred_check
      _
    $region39: #{mlp_forward.1} parent=1 // pred_check_branch
      %179 = sbr.rel (0) target = $region41
    $region40: #{mlp_forward.1} parent=1 // pred_region
      %181 = dma.done [#allocation5], 16
    $region41: #{mlp_forward.1} parent=1 // pred_fallthru
      _
    %182 = vsyncpa [#allocation4], 1
    %183 = vsyncpa [#allocation5], 1

</llo_original>
